<compile_context>
chip_gen: v7x
topology: tpu7x:2x2x1
jax: 0.10.0
libtpu: 0.0.40
codegen_flags: <defaults>
</compile_context>

<pallas_src>
import functools

import jax
import jax.numpy as jnp
from jax.experimental import pallas as pl
from jax.experimental.pallas import tpu as pltpu


# --------------------------------------------------------------------------
# Kernels
# --------------------------------------------------------------------------
def _lgconv_single_kernel(a_ref, x_ref, o_ref):
    """Whole problem in one VMEM block: out = A @ x (f32 accumulate)."""
    o_ref[...] = jnp.dot(
        a_ref[...], x_ref[...], preferred_element_type=jnp.float32
    ).astype(o_ref.dtype)


def _lgconv_tiled_kernel(a_ref, x_ref, o_ref, acc_ref, *, tk):
    """Row/K-tiled matmul.

    Grid = (row blocks, K blocks). A is streamed as (tm, tk) tiles; x is fully
    VMEM-resident (block index fixed at (0, 0)), sliced along K in-kernel.
    """
    k = pl.program_id(1)

    @pl.when(k == 0)
    def _():
        acc_ref[...] = jnp.zeros_like(acc_ref)

    start = pl.multiple_of(k * tk, tk)
    x_blk = x_ref[pl.ds(start, tk), :]
    acc_ref[...] += jnp.dot(
        a_ref[...], x_blk, preferred_element_type=jnp.float32
    )

    @pl.when(k == pl.num_programs(1) - 1)
    def _():
        o_ref[...] = acc_ref[...].astype(o_ref.dtype)


# --------------------------------------------------------------------------
# Wrapper
# --------------------------------------------------------------------------
def _round_up(a, b):
    return ((a + b - 1) // b) * b


def _pad2d(a, rows, cols):
    pr, pc = rows - a.shape[0], cols - a.shape[1]
    if pr or pc:
        a = jnp.pad(a, ((0, pr), (0, pc)))
    return a


@functools.partial(
    jax.jit, static_argnames=("tm", "tk", "single_block_max_bytes")
)
def ode_function_forward(t, x, adj, *, tm=256, tk=512,
                         single_block_max_bytes=8 << 20):
    """ODEFunction.forward: t is unused (non-time-dependent); returns A @ x."""
    del t  # non-time-dependent ODE function
    n, _ = adj.shape
    _, d = x.shape
    out_dtype = x.dtype

    # bf16 inputs, f32 accumulation: native MXU format, halves HBM traffic.
    adj_bf = adj.astype(jnp.bfloat16)
    x_bf = x.astype(jnp.bfloat16)

    in_bytes = n * n * 2 + n * d * 2
    out_bytes = n * d * jnp.dtype(out_dtype).itemsize
    cost = pl.CostEstimate(
        flops=2 * n * n * d,
        transcendentals=0,
        bytes_accessed=in_bytes + out_bytes,
    )

    # ---- Single-block path: whole problem fits comfortably in VMEM. ----
    if in_bytes + out_bytes <= single_block_max_bytes:
        return pl.pallas_call(
            _lgconv_single_kernel,
            out_shape=jax.ShapeDtypeStruct((n, d), out_dtype),
            in_specs=[
                pl.BlockSpec((n, n), lambda: (0, 0)),
                pl.BlockSpec((n, d), lambda: (0, 0)),
            ],
            out_specs=pl.BlockSpec((n, d), lambda: (0, 0)),
            cost_estimate=cost,
        )(adj_bf, x_bf)

    # ---- Tiled path: stream A, keep x resident, accumulate over K. ----
    n_m = _round_up(n, tm)          # padded row extent
    n_k = _round_up(n, tk)          # padded reduction extent
    a_p = _pad2d(adj_bf, n_m, n_k)  # zero-padding: exact reduction edges
    x_p = _pad2d(x_bf, n_k, d)

    grid = (n_m // tm, n_k // tk)

    out = pl.pallas_call(
        functools.partial(_lgconv_tiled_kernel, tk=tk),
        out_shape=jax.ShapeDtypeStruct((n_m, d), out_dtype),
        grid_spec=pltpu.PrefetchScalarGridSpec(
            num_scalar_prefetch=0,
            grid=grid,
            in_specs=[
                pl.BlockSpec((tm, tk), lambda i, k: (i, k)),   # A: streamed
                pl.BlockSpec((n_k, d), lambda i, k: (0, 0)),   # x: resident
            ],
            out_specs=pl.BlockSpec((tm, d), lambda i, k: (i, 0)),
            scratch_shapes=[pltpu.VMEM((tm, d), jnp.float32)],
        ),
        compiler_params=pltpu.CompilerParams(
            dimension_semantics=("parallel", "arbitrary"),
            vmem_limit_bytes=48 << 20,  # safe on v5e/v6e (128 MiB) and v7x (64 MiB)
        ),
        cost_estimate=cost,
    )(a_p, x_p)
    return out[:n]


# --------------------------------------------------------------------------
# Deterministic synthetic graph (the adjacency LT-OCF would feed in)
# --------------------------------------------------------------------------
def _build_synthetic_graph(key, n_nodes, density=0.05, dtype=jnp.float32):
    """Sparse-ish symmetric graph with symmetric D^-1/2 A D^-1/2 normalization."""
    rand = jax.random.uniform(key, (n_nodes, n_nodes))
    adj = (rand < density).astype(dtype)
    adj = jnp.maximum(adj, adj.T)                      # symmetrize
    adj = adj * (1.0 - jnp.eye(n_nodes, dtype=dtype))  # no self-loops
    deg = jnp.maximum(adj.sum(axis=1), 1.0)
    d_inv_sqrt = 1.0 / jnp.sqrt(deg)
    adj = adj * d_inv_sqrt[:, None] * d_inv_sqrt[None, :]
    return adj.astype(dtype)


def _bf16_reference(adj, x):
    """f32 matmul on bf16-rounded operands (matches kernel numerics)."""
    a = adj.astype(jnp.bfloat16).astype(jnp.float32)
    b = x.astype(jnp.bfloat16).astype(jnp.float32)
    return a @ b


if __name__ == "__main__":
    key = jax.random.PRNGKey(0)
    k_graph, k_x, k_graph2, k_x2 = jax.random.split(key, 4)

    t = jnp.float32(0.0)  # unused: ODE function is non-time-dependent

    # ---- Main case (matches the module's shipped scale): single-block path.
    n_nodes, emb_dim = 256, 128
    adj = _build_synthetic_graph(k_graph, n_nodes)
    x = jax.random.normal(k_x, (n_nodes, emb_dim), dtype=jnp.float32)

    out = jax.block_until_ready(ode_function_forward(t, x, adj))
    assert out.shape == (n_nodes, emb_dim)
    # Tight check vs. a reference with identical (bf16-rounded) operands.
    ref_bf = _bf16_reference(adj, x)
    assert jnp.allclose(out, ref_bf, atol=5e-3, rtol=5e-3)
    # Loose check vs. the exact f32 semantics of the original module.
    ref_f32 = adj @ x
    assert jnp.allclose(out, ref_f32, atol=2e-2, rtol=2e-2)

    # ---- Secondary check: force the tiled path (non-divisible N exercises
    # the zero-padded reduction edge and the resident-x / streamed-A tiling).
    n2, d2 = 1000, 128
    adj2 = _build_synthetic_graph(k_graph2, n2)
    x2 = jax.random.normal(k_x2, (n2, d2), dtype=jnp.float32)
    out2 = jax.block_until_ready(
        ode_function_forward(t, x2, adj2, single_block_max_bytes=0)
    )
    assert out2.shape == (n2, d2)
    ref2_bf = _bf16_reference(adj2, x2)
    assert jnp.allclose(out2, ref2_bf, atol=5e-3, rtol=5e-3)
    ref2_f32 = adj2 @ x2
    assert jnp.allclose(out2, ref2_f32, atol=2e-2, rtol=2e-2)

    print("KERNEL_OK")
</pallas_src>

<mosaic_0001>
module attributes {stable_mosaic.version = 11 : i64} {
  func.func @_lgconv_single_kernel(%arg0: memref<256x256xbf16, #tpu.memory_space<vmem>>, %arg1: memref<256x128xbf16, #tpu.memory_space<vmem>>, %arg2: memref<256x128xf32, #tpu.memory_space<vmem>>) attributes {dimension_semantics = [], scalar_prefetch = 0 : i64, scratch_operands = 0 : i64, tpu.core_type = #tpu.core_type<tc>} {
    %c0 = arith.constant 0 : index
    %c0_0 = arith.constant 0 : index
    %0 = vector.load %arg0[%c0, %c0_0] : memref<256x256xbf16, #tpu.memory_space<vmem>>, vector<256x256xbf16>
    %c0_1 = arith.constant 0 : index
    %c0_2 = arith.constant 0 : index
    %1 = vector.load %arg1[%c0_1, %c0_2] : memref<256x128xbf16, #tpu.memory_space<vmem>>, vector<256x128xbf16>
    %cst = arith.constant dense<0.000000e+00> : vector<256x128xf32>
    %2 = tpu.matmul %0, %1, %cst {dimension_numbers = #tpu.dot_dimension_numbers<[1], [0], [0], [1], [0, 0, 1, 1], [], []>} : vector<256x256xbf16>, vector<256x128xbf16>, vector<256x128xf32> -> vector<256x128xf32>
    %c0_3 = arith.constant 0 : index
    %c0_4 = arith.constant 0 : index
    %3 = vector.load %arg2[%c0_3, %c0_4] : memref<256x128xf32, #tpu.memory_space<vmem>>, vector<256x128xf32>
    tpu.vector_store %arg2[%c0_3, %c0_4], %2 {strides = array<i32>} : memref<256x128xf32, #tpu.memory_space<vmem>>, vector<256x128xf32>,
    return
  }
}

</mosaic_0001>

<llo_original>
// kernel: ode_function_forward.1
$region0: #{ode_function_forward.1}
  #allocation0 [shape = 'u32[]', space=smem, size = 0x4, offset = 0x4, fixed_abs, tag = 'smem constant byte address 0x4 - core index']
  #allocation1 [shape = 'u32[144,128]{1,0:T(1,128)}', space=vmem, size = 0x12000, scoped, tag = 'internal scratch']
  %s0 = inlined_call_operand.vmem [shape: bf16[256,256], index: 0, kind: input, shape index: {}]
  %s1 = inlined_call_operand.vmem [shape: bf16[256,128], index: 1, kind: input, shape index: {}]
  %s2 = inlined_call_operand.hbm [shape: f32[256,128], index: 2, kind: output, shape index: {}]
  %s3 = sld [smem:[#allocation0]]
  $region18: #{ode_function_forward.1} parent=0
    _
  %s5 = ssub.s32 1, %s3
  %s6 = scalar_select 0, %s5, %s3
  $region1: #{ode_function_forward.1} parent=0
    #allocation2 [shape = 'u8[131072]{0}', space=vmem, size = 0x20000, scoped, tag = 'output window, operand 0, single buffered']
    #allocation3 [shape = 's32[1]{0}', space=sflag, size = 0x4, scoped, tag = 'scoped memory for ode_function_forward.1']
    %7 = vsyncpa [#allocation3], 0
    // Predicated region
    $region2: #{ode_function_forward.1} parent=1 // pred_check
      _
    $region3: #{ode_function_forward.1} parent=1 // pred_check_branch
      %9 = sbr.rel (0) target = $region5
    $region4: #{ode_function_forward.1} parent=1 // pred_region
      _
    $region5: #{ode_function_forward.1} parent=1 // pred_fallthru
      _
    // Predicated region
    $region6: #{ode_function_forward.1} parent=1 // pred_check
      _
    $region7: #{ode_function_forward.1} parent=1 // pred_check_branch
      %11 = sbr.rel (0) target = $region9
    $region8: #{ode_function_forward.1} parent=1 // pred_region
      _
    $region9: #{ode_function_forward.1} parent=1 // pred_fallthru
      _
    %v13 = vld [vmem:[%s0] sm:$0xff]
    %v14 = vld [vmem:[%s0 + $0x8] sm:$0xff]
    %v15 = vld [vmem:[%s0 + $0x10] sm:$0xff]
    %v16 = vld [vmem:[%s0 + $0x18] sm:$0xff]
    %v17 = vld [vmem:[%s0 + $0x20] sm:$0xff]
    %v18 = vld [vmem:[%s0 + $0x28] sm:$0xff]
    %v19 = vld [vmem:[%s0 + $0x30] sm:$0xff]
    %v20 = vld [vmem:[%s0 + $0x38] sm:$0xff]
    %v21 = vld [vmem:[%s0 + $0x40] sm:$0xff]
    %v22 = vld [vmem:[%s0 + $0x48] sm:$0xff]
    %v23 = vld [vmem:[%s0 + $0x50] sm:$0xff]
    %v24 = vld [vmem:[%s0 + $0x58] sm:$0xff]
    %v25 = vld [vmem:[%s0 + $0x60] sm:$0xff]
    %v26 = vld [vmem:[%s0 + $0x68] sm:$0xff]
    %v27 = vld [vmem:[%s0 + $0x70] sm:$0xff]
    %v28 = vld [vmem:[%s0 + $0x78] sm:$0xff]
    %v29 = vld [vmem:[%s0 + $0x80] sm:$0xff]
    %v30 = vld [vmem:[%s0 + $0x88] sm:$0xff]
    %v31 = vld [vmem:[%s0 + $0x90] sm:$0xff]
    %v32 = vld [vmem:[%s0 + $0x98] sm:$0xff]
    %v33 = vld [vmem:[%s0 + $0xa0] sm:$0xff]
    %v34 = vld [vmem:[%s0 + $0xa8] sm:$0xff]
    %v35 = vld [vmem:[%s0 + $0xb0] sm:$0xff]
    %v36 = vld [vmem:[%s0 + $0xb8] sm:$0xff]
    %v37 = vld [vmem:[%s0 + $0xc0] sm:$0xff]
    %v38 = vld [vmem:[%s0 + $0xc8] sm:$0xff]
    %v39 = vld [vmem:[%s0 + $0xd0] sm:$0xff]
    %v40 = vld [vmem:[%s0 + $0xd8] sm:$0xff]
    %v41 = vld [vmem:[%s0 + $0xe0] sm:$0xff]
    %v42 = vld [vmem:[%s0 + $0xe8] sm:$0xff]
    %v43 = vld [vmem:[%s0 + $0xf0] sm:$0xff]
    %v44 = vld [vmem:[%s0 + $0xf8] sm:$0xff]
    %v45 = vld [vmem:[%s1] sm:$0xf]
    %v46 = vld [vmem:[%s1 + $0x4] sm:$0xf]
    %v47 = vld [vmem:[%s1 + $0x8] sm:$0xf]
    %v48 = vld [vmem:[%s1 + $0xc] sm:$0xf]
    %v49 = vld [vmem:[%s1 + $0x10] sm:$0xf]
    %v50 = vld [vmem:[%s1 + $0x14] sm:$0xf]
    %v51 = vld [vmem:[%s1 + $0x18] sm:$0xf]
    %v52 = vld [vmem:[%s1 + $0x1c] sm:$0xf]
    %v53 = vld [vmem:[%s1 + $0x20] sm:$0xf]
    %v54 = vld [vmem:[%s1 + $0x24] sm:$0xf]
    %v55 = vld [vmem:[%s1 + $0x28] sm:$0xf]
    %v56 = vld [vmem:[%s1 + $0x2c] sm:$0xf]
    %v57 = vld [vmem:[%s1 + $0x30] sm:$0xf]
    %v58 = vld [vmem:[%s1 + $0x34] sm:$0xf]
    %v59 = vld [vmem:[%s1 + $0x38] sm:$0xf]
    %v60 = vld [vmem:[%s1 + $0x3c] sm:$0xf]
    %v61 = vld [vmem:[%s1 + $0x40] sm:$0xf]
    %v62 = vld [vmem:[%s1 + $0x44] sm:$0xf]
    %v63 = vld [vmem:[%s1 + $0x48] sm:$0xf]
    %v64 = vld [vmem:[%s1 + $0x4c] sm:$0xf]
    %v65 = vld [vmem:[%s1 + $0x50] sm:$0xf]
    %v66 = vld [vmem:[%s1 + $0x54] sm:$0xf]
    %v67 = vld [vmem:[%s1 + $0x58] sm:$0xf]
    %v68 = vld [vmem:[%s1 + $0x5c] sm:$0xf]
    %v69 = vld [vmem:[%s1 + $0x60] sm:$0xf]
    %v70 = vld [vmem:[%s1 + $0x64] sm:$0xf]
    %v71 = vld [vmem:[%s1 + $0x68] sm:$0xf]
    %v72 = vld [vmem:[%s1 + $0x6c] sm:$0xf]
    %v73 = vld [vmem:[%s1 + $0x70] sm:$0xf]
    %v74 = vld [vmem:[%s1 + $0x74] sm:$0xf]
    %v75 = vld [vmem:[%s1 + $0x78] sm:$0xf]
    %v76 = vld [vmem:[%s1 + $0x7c] sm:$0xf]
    %v109 = vunpack.c.l.b16 %v13
    %v110 = vunpack.c.h.b16 %v13
    %v111 = vunpack.c.l.b16 %v14
    %v112 = vunpack.c.h.b16 %v14
    %v113 = vunpack.c.l.b16 %v15
    %v114 = vunpack.c.h.b16 %v15
    %v115 = vunpack.c.l.b16 %v16
    %v116 = vunpack.c.h.b16 %v16
    %v117 = vunpack.c.l.b16 %v17
    %v118 = vunpack.c.h.b16 %v17
    %v119 = vunpack.c.l.b16 %v18
    %v120 = vunpack.c.h.b16 %v18
    %v121 = vunpack.c.l.b16 %v19
    %v122 = vunpack.c.h.b16 %v19
    %v123 = vunpack.c.l.b16 %v20
    %v124 = vunpack.c.h.b16 %v20
    %v125 = vunpack.c.l.b16 %v21
    %v126 = vunpack.c.h.b16 %v21
    %v127 = vunpack.c.l.b16 %v22
    %v128 = vunpack.c.h.b16 %v22
    %v129 = vunpack.c.l.b16 %v23
    %v130 = vunpack.c.h.b16 %v23
    %v131 = vunpack.c.l.b16 %v24
    %v132 = vunpack.c.h.b16 %v24
    %v133 = vunpack.c.l.b16 %v25
    %v134 = vunpack.c.h.b16 %v25
    %v135 = vunpack.c.l.b16 %v26
    %v136 = vunpack.c.h.b16 %v26
    %v137 = vunpack.c.l.b16 %v27
    %v138 = vunpack.c.h.b16 %v27
    %v139 = vunpack.c.l.b16 %v28
    %v140 = vunpack.c.h.b16 %v28
    %v141 = vunpack.c.l.b16 %v29
    %v142 = vunpack.c.h.b16 %v29
    %v143 = vunpack.c.l.b16 %v30
    %v144 = vunpack.c.h.b16 %v30
    %v145 = vunpack.c.l.b16 %v31
    %v146 = vunpack.c.h.b16 %v31
    %v147 = vunpack.c.l.b16 %v32
    %v148 = vunpack.c.h.b16 %v32
    %v149 = vunpack.c.l.b16 %v33
    %v150 = vunpack.c.h.b16 %v33
    %v151 = vunpack.c.l.b16 %v34
    %v152 = vunpack.c.h.b16 %v34
    %v153 = vunpack.c.l.b16 %v35
    %v154 = vunpack.c.h.b16 %v35
    %v155 = vunpack.c.l.b16 %v36
    %v156 = vunpack.c.h.b16 %v36
    %v157 = vunpack.c.l.b16 %v37
    %v158 = vunpack.c.h.b16 %v37
    %v159 = vunpack.c.l.b16 %v38
    %v160 = vunpack.c.h.b16 %v38
    %v161 = vunpack.c.l.b16 %v39
    %v162 = vunpack.c.h.b16 %v39
    %v163 = vunpack.c.l.b16 %v40
    %v164 = vunpack.c.h.b16 %v40
    %v165 = vunpack.c.l.b16 %v41
    %v166 = vunpack.c.h.b16 %v41
    %v167 = vunpack.c.l.b16 %v42
    %v168 = vunpack.c.h.b16 %v42
    %v169 = vunpack.c.l.b16 %v43
    %v170 = vunpack.c.h.b16 %v43
    %v171 = vunpack.c.l.b16 %v44
    %v172 = vunpack.c.h.b16 %v44
    %v173 = vpack.c.b16 %v111, %v109
    %v174 = vpack.c.b16 %v112, %v110
    %v175 = vpack.c.b16 %v115, %v113
    %v176 = vpack.c.b16 %v116, %v114
    %v177 = vpack.c.b16 %v119, %v117
    %v178 = vpack.c.b16 %v120, %v118
    %v179 = vpack.c.b16 %v123, %v121
    %v180 = vpack.c.b16 %v124, %v122
    %v181 = vpack.c.b16 %v127, %v125
    %v182 = vpack.c.b16 %v128, %v126
    %v183 = vpack.c.b16 %v131, %v129
    %v184 = vpack.c.b16 %v132, %v130
    %v185 = vpack.c.b16 %v135, %v133
    %v186 = vpack.c.b16 %v136, %v134
    %v187 = vpack.c.b16 %v139, %v137
    %v188 = vpack.c.b16 %v140, %v138
    %v189 = vpack.c.b16 %v143, %v141
    %v190 = vpack.c.b16 %v144, %v142
    %v191 = vpack.c.b16 %v147, %v145
    %v192 = vpack.c.b16 %v148, %v146
    %v193 = vpack.c.b16 %v151, %v149
    %v194 = vpack.c.b16 %v152, %v150
    %v195 = vpack.c.b16 %v155, %v153
    %v196 = vpack.c.b16 %v156, %v154
    %v197 = vpack.c.b16 %v159, %v157
    %v198 = vpack.c.b16 %v160, %v158
    %v199 = vpack.c.b16 %v163, %v161
    %v200 = vpack.c.b16 %v164, %v162
    %v201 = vpack.c.b16 %v167, %v165
    %v202 = vpack.c.b16 %v168, %v166
    %v203 = vpack.c.b16 %v171, %v169
    %v204 = vpack.c.b16 %v172, %v170
    %v269 = vunpack.c.l.b16 %v45
    %v270 = vunpack.c.l.b16 %v46
    %v271 = vunpack.c.l.b16 %v47
    %v272 = vunpack.c.l.b16 %v48
    %v273 = vunpack.c.l.b16 %v49
    %v274 = vunpack.c.l.b16 %v50
    %v275 = vunpack.c.l.b16 %v51
    %v276 = vunpack.c.l.b16 %v52
    %v277 = vunpack.c.l.b16 %v53
    %v278 = vunpack.c.l.b16 %v54
    %v279 = vunpack.c.l.b16 %v55
    %v280 = vunpack.c.l.b16 %v56
    %v281 = vunpack.c.l.b16 %v57
    %v282 = vunpack.c.l.b16 %v58
    %v283 = vunpack.c.l.b16 %v59
    %v284 = vunpack.c.l.b16 %v60
    %v285 = vunpack.c.l.b16 %v61
    %v286 = vunpack.c.l.b16 %v62
    %v287 = vunpack.c.l.b16 %v63
    %v288 = vunpack.c.l.b16 %v64
    %v289 = vunpack.c.l.b16 %v65
    %v290 = vunpack.c.l.b16 %v66
    %v291 = vunpack.c.l.b16 %v67
    %v292 = vunpack.c.l.b16 %v68
    %v293 = vunpack.c.l.b16 %v69
    %v294 = vunpack.c.l.b16 %v70
    %v295 = vunpack.c.l.b16 %v71
    %v296 = vunpack.c.l.b16 %v72
    %v297 = vunpack.c.l.b16 %v73
    %v298 = vunpack.c.l.b16 %v74
    %v299 = vunpack.c.l.b16 %v75
    %v300 = vunpack.c.l.b16 %v76
    %v301 = vpack.c.b16 %v270, %v269
    %v302 = vpack.c.b16 %v272, %v271
    %v303 = vpack.c.b16 %v274, %v273
    %v304 = vpack.c.b16 %v276, %v275
    %v305 = vpack.c.b16 %v278, %v277
    %v306 = vpack.c.b16 %v280, %v279
    %v307 = vpack.c.b16 %v282, %v281
    %v308 = vpack.c.b16 %v284, %v283
    %v309 = vpack.c.b16 %v286, %v285
    %v310 = vpack.c.b16 %v288, %v287
    %v311 = vpack.c.b16 %v290, %v289
    %v312 = vpack.c.b16 %v292, %v291
    %v313 = vpack.c.b16 %v294, %v293
    %v314 = vpack.c.b16 %v296, %v295
    %v315 = vpack.c.b16 %v298, %v297
    %v316 = vpack.c.b16 %v300, %v299
    %333 = vmatprep.subr.bf16.mxu0 0
    %334 = vmatpush1.bf16.msra.mxu0 %v301
    %335 = vmatprep.subr.bf16.mxu0 0
    %336 = vmatpush1.bf16.msra.mxu0 %v302
    %337 = vmatprep.subr.bf16.mxu0 0
    %338 = vmatpush1.bf16.msra.mxu0 %v303
    %339 = vmatprep.subr.bf16.mxu0 0
    %340 = vmatpush1.bf16.msra.mxu0 %v304
    %341 = vmatprep.subr.bf16.mxu0 0
    %342 = vmatpush1.bf16.msra.mxu0 %v305
    %343 = vmatprep.subr.bf16.mxu0 0
    %344 = vmatpush1.bf16.msra.mxu0 %v306
    %345 = vmatprep.subr.bf16.mxu0 0
    %346 = vmatpush1.bf16.msra.mxu0 %v307
    %347 = vmatprep.subr.bf16.mxu0 0
    %348 = vmatpush1.bf16.msra.mxu0 %v308
    %349 = vmatprep.subr.bf16.mxu0 0
    %350 = vmatpush1.bf16.msra.mxu0 %v309
    %351 = vmatprep.subr.bf16.mxu0 0
    %352 = vmatpush1.bf16.msra.mxu0 %v310
    %353 = vmatprep.subr.bf16.mxu0 0
    %354 = vmatpush1.bf16.msra.mxu0 %v311
    %355 = vmatprep.subr.bf16.mxu0 0
    %356 = vmatpush1.bf16.msra.mxu0 %v312
    %357 = vmatprep.subr.bf16.mxu0 0
    %358 = vmatpush1.bf16.msra.mxu0 %v313
    %359 = vmatprep.subr.bf16.mxu0 0
    %360 = vmatpush1.bf16.msra.mxu0 %v314
    %361 = vmatprep.subr.bf16.mxu0 0
    %362 = vmatpush1.bf16.msra.mxu0 %v315
    %363 = vmatprep.subr.bf16.mxu0 0
    %364 = vmatpush1.bf16.msra.mxu0 %v316
    %365 = vmatprep.mubr.bf16.mxu0 %v174
    %366 = vmatmul.mubr.bf16.gmra.mrb[0].mxu0 %v173
    %v367 = vpop.f32.mrb[0].mxu0
    %v368 = vadd.f32 0.0, %v367
    %v369 = vpop.f32.mrb[0].mxu0
    %v370 = vpop.f32.mrb[0].mxu0
    %v371 = vadd.f32 0.0, %v370
    %v372 = vpop.f32.mrb[0].mxu0
    %373 = vmatprep.mubr.bf16.mxu0 %v176
    %374 = vmatmul.mubr.bf16.gmra.mrb[0].mxu0 %v175
    %v375 = vpop.f32.mrb[0].mxu0
    %v376 = vadd.f32 0.0, %v375
    %v377 = vpop.f32.mrb[0].mxu0
    %v378 = vpop.f32.mrb[0].mxu0
    %v379 = vadd.f32 0.0, %v378
    %v380 = vpop.f32.mrb[0].mxu0
    %381 = vmatprep.mubr.bf16.mxu0 %v178
    %382 = vmatmul.mubr.bf16.gmra.mrb[0].mxu0 %v177
    %v383 = vpop.f32.mrb[0].mxu0
    %v384 = vadd.f32 0.0, %v383
    %v385 = vpop.f32.mrb[0].mxu0
    %v386 = vpop.f32.mrb[0].mxu0
    %v387 = vadd.f32 0.0, %v386
    %v388 = vpop.f32.mrb[0].mxu0
    %389 = vmatprep.mubr.bf16.mxu0 %v180
    %390 = vmatmul.mubr.bf16.gmra.mrb[0].mxu0 %v179
    %v391 = vpop.f32.mrb[0].mxu0
    %v392 = vadd.f32 0.0, %v391
    %v393 = vpop.f32.mrb[0].mxu0
    %v394 = vpop.f32.mrb[0].mxu0
    %v395 = vadd.f32 0.0, %v394
    %v396 = vpop.f32.mrb[0].mxu0
    %397 = vmatprep.mubr.bf16.mxu0 %v182
    %398 = vmatmul.mubr.bf16.gmra.mrb[0].mxu0 %v181
    %v399 = vpop.f32.mrb[0].mxu0
    %v400 = vadd.f32 0.0, %v399
    %v401 = vpop.f32.mrb[0].mxu0
    %v402 = vpop.f32.mrb[0].mxu0
    %v403 = vadd.f32 0.0, %v402
    %v404 = vpop.f32.mrb[0].mxu0
    %405 = vmatprep.mubr.bf16.mxu0 %v184
    %406 = vmatmul.mubr.bf16.gmra.mrb[0].mxu0 %v183
    %v407 = vpop.f32.mrb[0].mxu0
    %v408 = vadd.f32 0.0, %v407
    %v409 = vpop.f32.mrb[0].mxu0
    %v410 = vpop.f32.mrb[0].mxu0
    %v411 = vadd.f32 0.0, %v410
    %v412 = vpop.f32.mrb[0].mxu0
    %413 = vmatprep.mubr.bf16.mxu0 %v186
    %414 = vmatmul.mubr.bf16.gmra.mrb[0].mxu0 %v185
    %v415 = vpop.f32.mrb[0].mxu0
    %v416 = vadd.f32 0.0, %v415
    %v417 = vpop.f32.mrb[0].mxu0
    %v418 = vpop.f32.mrb[0].mxu0
    %v419 = vadd.f32 0.0, %v418
    %v420 = vpop.f32.mrb[0].mxu0
    %421 = vmatprep.mubr.bf16.mxu0 %v188
    %422 = vmatmul.mubr.bf16.gmra.mrb[0].mxu0 %v187
    %v423 = vpop.f32.mrb[0].mxu0
    %v424 = vadd.f32 0.0, %v423
    %v425 = vpop.f32.mrb[0].mxu0
    %v426 = vpop.f32.mrb[0].mxu0
    %v427 = vadd.f32 0.0, %v426
    %v428 = vpop.f32.mrb[0].mxu0
    %429 = vmatprep.mubr.bf16.mxu0 %v190
    %430 = vmatmul.mubr.bf16.gmra.mrb[0].mxu0 %v189
    %v431 = vpop.f32.mrb[0].mxu0
    %v432 = vadd.f32 0.0, %v431
    %v433 = vpop.f32.mrb[0].mxu0
    %v434 = vpop.f32.mrb[0].mxu0
    %v435 = vadd.f32 0.0, %v434
    %v436 = vpop.f32.mrb[0].mxu0
    %437 = vmatprep.mubr.bf16.mxu0 %v192
    %438 = vmatmul.mubr.bf16.gmra.mrb[0].mxu0 %v191
    %v439 = vpop.f32.mrb[0].mxu0
    %v440 = vadd.f32 0.0, %v439
    %v441 = vpop.f32.mrb[0].mxu0
    %v442 = vpop.f32.mrb[0].mxu0
    %v443 = vadd.f32 0.0, %v442
    %v444 = vpop.f32.mrb[0].mxu0
    %445 = vmatprep.mubr.bf16.mxu0 %v194
    %446 = vmatmul.mubr.bf16.gmra.mrb[0].mxu0 %v193
    %v447 = vpop.f32.mrb[0].mxu0
    %v448 = vadd.f32 0.0, %v447
    %v449 = vpop.f32.mrb[0].mxu0
    %v450 = vpop.f32.mrb[0].mxu0
    %v451 = vadd.f32 0.0, %v450
    %v452 = vpop.f32.mrb[0].mxu0
    %453 = vmatprep.mubr.bf16.mxu0 %v196
    %454 = vmatmul.mubr.bf16.gmra.mrb[0].mxu0 %v195
    %v455 = vpop.f32.mrb[0].mxu0
    %v456 = vadd.f32 0.0, %v455
    %v457 = vpop.f32.mrb[0].mxu0
    %v458 = vpop.f32.mrb[0].mxu0
    %v459 = vadd.f32 0.0, %v458
    %v460 = vpop.f32.mrb[0].mxu0
    %461 = vmatprep.mubr.bf16.mxu0 %v198
    %462 = vmatmul.mubr.bf16.gmra.mrb[0].mxu0 %v197
    %v463 = vpop.f32.mrb[0].mxu0
    %v464 = vadd.f32 0.0, %v463
    %v465 = vpop.f32.mrb[0].mxu0
    %v466 = vpop.f32.mrb[0].mxu0
    %v467 = vadd.f32 0.0, %v466
    %v468 = vpop.f32.mrb[0].mxu0
    %469 = vmatprep.mubr.bf16.mxu0 %v200
    %470 = vmatmul.mubr.bf16.gmra.mrb[0].mxu0 %v199
    %v471 = vpop.f32.mrb[0].mxu0
    %v472 = vadd.f32 0.0, %v471
    %v473 = vpop.f32.mrb[0].mxu0
    %v474 = vpop.f32.mrb[0].mxu0
    %v475 = vadd.f32 0.0, %v474
    %v476 = vpop.f32.mrb[0].mxu0
    %477 = vmatprep.mubr.bf16.mxu0 %v202
    %478 = vmatmul.mubr.bf16.gmra.mrb[0].mxu0 %v201
    %v479 = vpop.f32.mrb[0].mxu0
    %v480 = vadd.f32 0.0, %v479
    %v481 = vpop.f32.mrb[0].mxu0
    %v482 = vpop.f32.mrb[0].mxu0
    %v483 = vadd.f32 0.0, %v482
    %v484 = vpop.f32.mrb[0].mxu0
    %485 = vmatprep.mubr.bf16.mxu0 %v204
    %486 = vmatmul.mubr.bf16.gmra.mrb[0].mxu0 %v203
    %v487 = vpop.f32.mrb[0].mxu0
    %v488 = vadd.f32 0.0, %v487
    %v489 = vpop.f32.mrb[0].mxu0
    %v490 = vpop.f32.mrb[0].mxu0
    %v491 = vadd.f32 0.0, %v490
    %v492 = vpop.f32.mrb[0].mxu0
    %493 = vdwg.mxu0
    %494 = vst [vmem:[#allocation2] sm:$0xff] %v368
    %495 = vst [vmem:[#allocation2 + $0x8] sm:$0xff] %v371
    %496 = vst [vmem:[#allocation2 + $0x10] sm:$0xff] %v376
    %497 = vst [vmem:[#allocation2 + $0x18] sm:$0xff] %v379
    %498 = vst [vmem:[#allocation2 + $0x20] sm:$0xff] %v384
    %499 = vst [vmem:[#allocation2 + $0x28] sm:$0xff] %v387
    %500 = vst [vmem:[#allocation2 + $0x30] sm:$0xff] %v392
    %501 = vst [vmem:[#allocation2 + $0x38] sm:$0xff] %v395
    %502 = vst [vmem:[#allocation2 + $0x40] sm:$0xff] %v400
    %503 = vst [vmem:[#allocation2 + $0x48] sm:$0xff] %v403
    %504 = vst [vmem:[#allocation2 + $0x50] sm:$0xff] %v408
    %505 = vst [vmem:[#allocation2 + $0x58] sm:$0xff] %v411
    %506 = vst [vmem:[#allocation2 + $0x60] sm:$0xff] %v416
    %507 = vst [vmem:[#allocation2 + $0x68] sm:$0xff] %v419
    %508 = vst [vmem:[#allocation2 + $0x70] sm:$0xff] %v424
    %509 = vst [vmem:[#allocation2 + $0x78] sm:$0xff] %v427
    %510 = vst [vmem:[#allocation2 + $0x80] sm:$0xff] %v432
    %511 = vst [vmem:[#allocation2 + $0x88] sm:$0xff] %v435
    %512 = vst [vmem:[#allocation2 + $0x90] sm:$0xff] %v440
    %513 = vst [vmem:[#allocation2 + $0x98] sm:$0xff] %v443
    %514 = vst [vmem:[#allocation2 + $0xa0] sm:$0xff] %v448
    %515 = vst [vmem:[#allocation2 + $0xa8] sm:$0xff] %v451
    %516 = vst [vmem:[#allocation2 + $0xb0] sm:$0xff] %v456
    %517 = vst [vmem:[#allocation2 + $0xb8] sm:$0xff] %v459
    %518 = vst [vmem:[#allocation2 + $0xc0] sm:$0xff] %v464
    %519 = vst [vmem:[#allocation2 + $0xc8] sm:$0xff] %v467
    %520 = vst [vmem:[#allocation2 + $0xd0] sm:$0xff] %v472
    %521 = vst [vmem:[#allocation2 + $0xd8] sm:$0xff] %v475
    %522 = vst [vmem:[#allocation2 + $0xe0] sm:$0xff] %v480
    %523 = vst [vmem:[#allocation2 + $0xe8] sm:$0xff] %v483
    %524 = vst [vmem:[#allocation2 + $0xf0] sm:$0xff] %v488
    %525 = vst [vmem:[#allocation2 + $0xf8] sm:$0xff] %v491
    // Predicated region
    $region10: #{ode_function_forward.1} parent=1 // pred_check
      _
    $region11: #{ode_function_forward.1} parent=1 // pred_check_branch
      %527 = sbr.rel (0) target = $region13
    $region12: #{ode_function_forward.1} parent=1 // pred_region
      %s529 = ssub.s32 4096, 4096
      %530 = vsyncadd [#allocation3], %s529
      %s531 = sshll.u32 [#allocation2], 4
      %s532 = int_to_ptr.vmem [resolvable:$true] %s531
      %537 = dma.vmem_to_hbm [thread:$0]  %s532, 4096, %s2, [#allocation3], 128, 128, 8
    $region13: #{ode_function_forward.1} parent=1 // pred_fallthru
      _
    // Predicated region
    $region14: #{ode_function_forward.1} parent=1 // pred_check
      _
    $region15: #{ode_function_forward.1} parent=1 // pred_check_branch
      %539 = sbr.rel (0) target = $region17
    $region16: #{ode_function_forward.1} parent=1 // pred_region
      %540 = dma.done [#allocation3], 4096
    $region17: #{ode_function_forward.1} parent=1 // pred_fallthru
      _
    %541 = vsyncpa [#allocation3], 1

</llo_original>
